<compile_context>
chip_gen: v6e
topology: v6e:2x2x1
jax: 0.10.0
libtpu: 0.0.40
codegen_flags: <defaults>
</compile_context>

<pallas_src>
import math

import jax
import jax.numpy as jnp
from jax.experimental import pallas as pl
from jax.experimental.pallas import tpu as pltpu

WINDOW_SIZE = 11
SIGMA = 1.5
C1 = 0.01 ** 2
C2 = 0.03 ** 2


def _gaussian_1d(window_size=WINDOW_SIZE, sigma=SIGMA):
    # Same construction as the PyTorch `gaussian()` helper (deterministic).
    g = [math.exp(-((x - window_size // 2) ** 2) / (2.0 * sigma ** 2))
         for x in range(window_size)]
    s = sum(g)
    return [v / s for v in g]


_G = _gaussian_1d()


def _band_matrix(n):
    """(n, n) banded matrix B with B[k, j] = g[k - j + pad], zero outside the band.

    x_blurred = x @ B  implements the 1-D Gaussian conv along the last axis
    with the same zero-padding as F.conv2d(padding=window//2).
    """
    pad = WINDOW_SIZE // 2
    g = jnp.asarray(_G, dtype=jnp.float32)
    a = jnp.arange(n)
    idx = a[:, None] - a[None, :] + pad
    valid = (idx >= 0) & (idx < WINDOW_SIZE)
    return jnp.where(valid, g[jnp.clip(idx, 0, WINDOW_SIZE - 1)], 0.0).astype(jnp.float32)


def ssim_kernel(x1_ref, x2_ref, bw_ref, bh_ref, o_ref):
    # x blocks: (1, H, P*W) lane-dense planes packed along lanes.
    # bw: (P*W, P*W) block-diagonal horizontal band (kron(I_P, band_W)).
    # bh: (H, H) vertical band.
    # o block: (1, P*W) per-column sums of the SSIM map.
    H = x1_ref.shape[1]

    x1 = x1_ref[0]                    # (H, PW)
    x2 = x2_ref[0]
    bw = bw_ref[...]                  # (PW, PW)
    bh = bh_ref[...]                  # (H, H)

    # Horizontal Gaussian pass for all five quantities: ONE MXU matmul.
    q = jnp.concatenate([x1, x2, x1 * x1, x2 * x2, x1 * x2], axis=0)   # (5H, PW)
    qh = jnp.dot(q, bw, preferred_element_type=jnp.float32)            # (5H, PW)

    # Vertical Gaussian pass: five (H, H) @ (H, PW) matmuls, shared band matrix.
    mu1, mu2, s11, s22, s12 = [
        jnp.dot(bh, qh[i * H:(i + 1) * H], preferred_element_type=jnp.float32)
        for i in range(5)
    ]

    mu1_sq = mu1 * mu1
    mu2_sq = mu2 * mu2
    mu1_mu2 = mu1 * mu2
    sigma1_sq = s11 - mu1_sq
    sigma2_sq = s22 - mu2_sq
    sigma12 = s12 - mu1_mu2

    num = (2.0 * mu1_mu2 + C1) * (2.0 * sigma12 + C2)
    den = (mu1_sq + mu2_sq + C1) * (sigma1_sq + sigma2_sq + C2)
    # den >= ~C1*C2 > 0, so the approx reciprocal (EUP slot) is safe here.
    ssim_map = num * pl.reciprocal(den, approx=True)

    # Per-column (lane) sums; per-plane means are finished in the JAX wrapper.
    o_ref[...] = jnp.sum(ssim_map, axis=0, keepdims=True)


def ssim(img1, img2, size_average=True):
    """SSIM of two NCHW float32 images, matching the PyTorch SSIM module."""
    assert img1.shape == img2.shape
    N, C, H, W = img1.shape
    NC = N * C

    # ---- choose how many planes to pack along the lane axis -----------------
    P = max(1, -(-128 // W))          # reach >= 128 lanes
    while P > 1 and P * W > 512:      # keep the block-diagonal band matrix small
        P -= 1
    PW = P * W
    NB = -(-NC // P)                  # grid steps
    NC_pad = NB * P

    x1 = img1.astype(jnp.float32).reshape(NC, H, W)
    x2 = img2.astype(jnp.float32).reshape(NC, H, W)
    if NC_pad != NC:
        zpad = ((0, NC_pad - NC), (0, 0), (0, 0))
        x1 = jnp.pad(x1, zpad)
        x2 = jnp.pad(x2, zpad)
    # Pack P planes per block along the lane axis: (NB, H, P*W).
    x1 = x1.reshape(NB, P, H, W).transpose(0, 2, 1, 3).reshape(NB, H, PW)
    x2 = x2.reshape(NB, P, H, W).transpose(0, 2, 1, 3).reshape(NB, H, PW)

    # Banded blur matrices (zero-padded conv semantics baked in).
    bh = _band_matrix(H).T                                            # (H, H)
    bw = jnp.kron(jnp.eye(P, dtype=jnp.float32), _band_matrix(W))     # (PW, PW)
    # TODO(synk): for very large W (>512) the horizontal band should itself be
    # tiled along W instead of materialized as a dense (PW, PW) matrix.

    # VMEM sizing: double-buffered inputs + band matrices + elementwise temps.
    blk_bytes = H * PW * 4
    vmem_est = 4 * blk_bytes + 2 * (PW * PW + H * H) * 4 + 24 * blk_bytes
    vmem_limit = int(min(max(vmem_est, 16 << 20), 48 << 20))

    col_sums = pl.pallas_call(
        ssim_kernel,
        out_shape=jax.ShapeDtypeStruct((NB, PW), jnp.float32),
        grid_spec=pltpu.PrefetchScalarGridSpec(
            num_scalar_prefetch=0,
            grid=(NB,),
            in_specs=[
                pl.BlockSpec((1, H, PW), lambda b: (b, 0, 0)),
                pl.BlockSpec((1, H, PW), lambda b: (b, 0, 0)),
                pl.BlockSpec((PW, PW), lambda b: (0, 0)),
                pl.BlockSpec((H, H), lambda b: (0, 0)),
            ],
            out_specs=pl.BlockSpec((1, PW), lambda b: (b, 0)),
        ),
        compiler_params=pltpu.CompilerParams(
            dimension_semantics=("parallel",),
            vmem_limit_bytes=vmem_limit,
        ),
    )(x1, x2, bw, bh)

    # Finish the reductions in JAX (cheap glue).
    plane_means = col_sums.reshape(NB * P, W).sum(axis=-1)[:NC] / float(H * W)
    plane_means = plane_means.reshape(N, C)
    if size_average:
        # ssim_map.mean() over all (N, C, H, W) elements.
        return jnp.mean(plane_means)
    else:
        # ssim_map.mean(1).mean(1).mean(1) -> per-batch mean.
        return jnp.mean(plane_means, axis=1)


if __name__ == "__main__":
    key = jax.random.PRNGKey(0)
    k1, k2 = jax.random.split(key)
    N, C, H, W = 2, 4, 16, 16
    img1 = jax.random.uniform(k1, (N, C, H, W), dtype=jnp.float32)
    img2 = jax.random.uniform(k2, (N, C, H, W), dtype=jnp.float32)

    out = ssim(img1, img2, size_average=True)
    out = jax.block_until_ready(out)

    print("KERNEL_OK")
</pallas_src>

<mosaic_0001>
module attributes {stable_mosaic.version = 11 : i64} {
  func.func @ssim_kernel(%arg0: i32, %arg1: memref<1x16x128xf32, #tpu.memory_space<vmem>>, %arg2: memref<1x16x128xf32, #tpu.memory_space<vmem>>, %arg3: memref<128x128xf32, #tpu.memory_space<vmem>>, %arg4: memref<16x16xf32, #tpu.memory_space<vmem>>, %arg5: memref<1x128xf32, #tpu.memory_space<vmem>>) attributes {dimension_semantics = [#tpu.dimension_semantics<parallel>], iteration_bounds = array<i64: 1>, scalar_prefetch = 0 : i64, scratch_operands = 0 : i64, tpu.core_type = #tpu.core_type<tc>, window_params = [{transform_indices = @transform_0, window_bounds = array<i64: 1, 16, 128>}, {transform_indices = @transform_1, window_bounds = array<i64: 1, 16, 128>}, {pipeline_mode = #tpu.pipeline_mode<synchronous>, transform_indices = @transform_2, window_bounds = array<i64: 128, 128>}, {pipeline_mode = #tpu.pipeline_mode<synchronous>, transform_indices = @transform_3, window_bounds = array<i64: 16, 16>}, {transform_indices = @transform_4, window_bounds = array<i64: 1, 128>}]} {
    %c0 = arith.constant 0 : index
    %c0_0 = arith.constant 0 : index
    %c0_1 = arith.constant 0 : index
    %0 = vector.load %arg1[%c0, %c0_0, %c0_1] : memref<1x16x128xf32, #tpu.memory_space<vmem>>, vector<1x16x128xf32>
    %1 = vector.shape_cast %0 : vector<1x16x128xf32> to vector<16x128xf32>
    %c0_2 = arith.constant 0 : index
    %c0_3 = arith.constant 0 : index
    %c0_4 = arith.constant 0 : index
    %2 = vector.load %arg2[%c0_2, %c0_3, %c0_4] : memref<1x16x128xf32, #tpu.memory_space<vmem>>, vector<1x16x128xf32>
    %3 = vector.shape_cast %2 : vector<1x16x128xf32> to vector<16x128xf32>
    %c0_5 = arith.constant 0 : index
    %c0_6 = arith.constant 0 : index
    %4 = vector.load %arg3[%c0_5, %c0_6] : memref<128x128xf32, #tpu.memory_space<vmem>>, vector<128x128xf32>
    %c0_7 = arith.constant 0 : index
    %c0_8 = arith.constant 0 : index
    %5 = vector.load %arg4[%c0_7, %c0_8] : memref<16x16xf32, #tpu.memory_space<vmem>>, vector<16x16xf32>
    %6 = arith.mulf %1, %1 : vector<16x128xf32>
    %7 = arith.mulf %3, %3 : vector<16x128xf32>
    %8 = arith.mulf %1, %3 : vector<16x128xf32>
    %9 = tpu.concatenate %1, %3, %6, %7, %8 in 0 : vector<16x128xf32>, vector<16x128xf32>, vector<16x128xf32>, vector<16x128xf32>, vector<16x128xf32> -> vector<80x128xf32>
    %cst = arith.constant dense<0.000000e+00> : vector<80x128xf32>
    %10 = tpu.matmul %9, %4, %cst {dimension_numbers = #tpu.dot_dimension_numbers<[1], [0], [0], [1], [0, 0, 1, 1], [], []>} : vector<80x128xf32>, vector<128x128xf32>, vector<80x128xf32> -> vector<80x128xf32>
    %11 = vector.extract_strided_slice %10 {offsets = [0, 0], sizes = [16, 128], strides = [1, 1]} : vector<80x128xf32> to vector<16x128xf32>
    %cst_9 = arith.constant dense<0.000000e+00> : vector<16x128xf32>
    %12 = tpu.matmul %5, %11, %cst_9 {dimension_numbers = #tpu.dot_dimension_numbers<[1], [0], [0], [1], [0, 0, 1, 1], [], []>} : vector<16x16xf32>, vector<16x128xf32>, vector<16x128xf32> -> vector<16x128xf32>
    %13 = vector.extract_strided_slice %10 {offsets = [16, 0], sizes = [16, 128], strides = [1, 1]} : vector<80x128xf32> to vector<16x128xf32>
    %cst_10 = arith.constant dense<0.000000e+00> : vector<16x128xf32>
    %14 = tpu.matmul %5, %13, %cst_10 {dimension_numbers = #tpu.dot_dimension_numbers<[1], [0], [0], [1], [0, 0, 1, 1], [], []>} : vector<16x16xf32>, vector<16x128xf32>, vector<16x128xf32> -> vector<16x128xf32>
    %15 = vector.extract_strided_slice %10 {offsets = [32, 0], sizes = [16, 128], strides = [1, 1]} : vector<80x128xf32> to vector<16x128xf32>
    %cst_11 = arith.constant dense<0.000000e+00> : vector<16x128xf32>
    %16 = tpu.matmul %5, %15, %cst_11 {dimension_numbers = #tpu.dot_dimension_numbers<[1], [0], [0], [1], [0, 0, 1, 1], [], []>} : vector<16x16xf32>, vector<16x128xf32>, vector<16x128xf32> -> vector<16x128xf32>
    %17 = vector.extract_strided_slice %10 {offsets = [48, 0], sizes = [16, 128], strides = [1, 1]} : vector<80x128xf32> to vector<16x128xf32>
    %cst_12 = arith.constant dense<0.000000e+00> : vector<16x128xf32>
    %18 = tpu.matmul %5, %17, %cst_12 {dimension_numbers = #tpu.dot_dimension_numbers<[1], [0], [0], [1], [0, 0, 1, 1], [], []>} : vector<16x16xf32>, vector<16x128xf32>, vector<16x128xf32> -> vector<16x128xf32>
    %19 = vector.extract_strided_slice %10 {offsets = [64, 0], sizes = [16, 128], strides = [1, 1]} : vector<80x128xf32> to vector<16x128xf32>
    %cst_13 = arith.constant dense<0.000000e+00> : vector<16x128xf32>
    %20 = tpu.matmul %5, %19, %cst_13 {dimension_numbers = #tpu.dot_dimension_numbers<[1], [0], [0], [1], [0, 0, 1, 1], [], []>} : vector<16x16xf32>, vector<16x128xf32>, vector<16x128xf32> -> vector<16x128xf32>
    %21 = arith.mulf %12, %12 : vector<16x128xf32>
    %22 = arith.mulf %14, %14 : vector<16x128xf32>
    %23 = arith.mulf %12, %14 : vector<16x128xf32>
    %24 = arith.subf %16, %21 : vector<16x128xf32>
    %25 = arith.subf %18, %22 : vector<16x128xf32>
    %26 = arith.subf %20, %23 : vector<16x128xf32>
    %cst_14 = arith.constant 2.000000e+00 : f32
    %27 = vector.broadcast %cst_14 : f32 to vector<16x128xf32>
    %28 = arith.mulf %27, %23 : vector<16x128xf32>
    %cst_15 = arith.constant 9.99999974E-5 : f32
    %29 = vector.broadcast %cst_15 : f32 to vector<16x128xf32>
    %30 = arith.addf %28, %29 : vector<16x128xf32>
    %cst_16 = arith.constant 2.000000e+00 : f32
    %31 = vector.broadcast %cst_16 : f32 to vector<16x128xf32>
    %32 = arith.mulf %31, %26 : vector<16x128xf32>
    %cst_17 = arith.constant 8.99999984E-4 : f32
    %33 = vector.broadcast %cst_17 : f32 to vector<16x128xf32>
    %34 = arith.addf %32, %33 : vector<16x128xf32>
    %35 = arith.mulf %30, %34 : vector<16x128xf32>
    %36 = arith.addf %21, %22 : vector<16x128xf32>
    %cst_18 = arith.constant 9.99999974E-5 : f32
    %37 = vector.broadcast %cst_18 : f32 to vector<16x128xf32>
    %38 = arith.addf %36, %37 : vector<16x128xf32>
    %39 = arith.addf %24, %25 : vector<16x128xf32>
    %cst_19 = arith.constant 8.99999984E-4 : f32
    %40 = vector.broadcast %cst_19 : f32 to vector<16x128xf32>
    %41 = arith.addf %39, %40 : vector<16x128xf32>
    %42 = arith.mulf %38, %41 : vector<16x128xf32>
    %43 = tpu.reciprocal %42 {approx = true} : vector<16x128xf32> -> vector<16x128xf32>
    %44 = arith.mulf %35, %43 : vector<16x128xf32>
    %cst_20 = arith.constant dense<0.000000e+00> : vector<128xf32>
    %45 = vector.multi_reduction <add>, %44, %cst_20 [0] : vector<16x128xf32> to vector<128xf32>
    %46 = vector.shape_cast %45 : vector<128xf32> to vector<1x128xf32>
    %c0_21 = arith.constant 0 : index
    %c0_22 = arith.constant 0 : index
    %47 = vector.load %arg5[%c0_21, %c0_22] : memref<1x128xf32, #tpu.memory_space<vmem>>, vector<1x128xf32>
    tpu.vector_store %arg5[%c0_21, %c0_22], %46 {strides = array<i32>} : memref<1x128xf32, #tpu.memory_space<vmem>>, vector<1x128xf32>,
    return
  }
  func.func @transform_0(%arg0: i32) -> (i32, i32, i32) {
    %c0_i32 = arith.constant 0 : i32
    %c0_i32_0 = arith.constant 0 : i32
    %c0_i32_1 = arith.constant 0 : i32
    return %arg0, %c0_i32, %c0_i32_0 : i32, i32, i32
  }
  func.func @transform_1(%arg0: i32) -> (i32, i32, i32) {
    %c0_i32 = arith.constant 0 : i32
    %c0_i32_0 = arith.constant 0 : i32
    %c0_i32_1 = arith.constant 0 : i32
    return %arg0, %c0_i32, %c0_i32_0 : i32, i32, i32
  }
  func.func @transform_2(%arg0: i32) -> (i32, i32) {
    %c0_i32 = arith.constant 0 : i32
    %c0_i32_0 = arith.constant 0 : i32
    %c0_i32_1 = arith.constant 0 : i32
    return %c0_i32, %c0_i32_0 : i32, i32
  }
  func.func @transform_3(%arg0: i32) -> (i32, i32) {
    %c0_i32 = arith.constant 0 : i32
    %c0_i32_0 = arith.constant 0 : i32
    %c0_i32_1 = arith.constant 0 : i32
    return %c0_i32, %c0_i32_0 : i32, i32
  }
  func.func @transform_4(%arg0: i32) -> (i32, i32) {
    %c0_i32 = arith.constant 0 : i32
    %c0_i32_0 = arith.constant 0 : i32
    return %arg0, %c0_i32 : i32, i32
  }
}

</mosaic_0001>

<llo_original>
// kernel: tpu_custom_call.1
$region0: #{tpu_custom_call.1}
  #allocation0 [shape = 'u32[]', space=smem, size = 0x4, offset = 0x4, fixed_abs, tag = 'smem constant byte address 0x4 - core index']
  #allocation1 [shape = 'u32[144,128]{1,0:T(1,128)}', space=vmem, size = 0x12000, scoped, tag = 'internal scratch']
  %s0 = inlined_call_operand.hbm [shape: f32[1,16,128], index: 0, kind: input, shape index: {}]
  %s1 = inlined_call_operand.hbm [shape: f32[1,16,128], index: 1, kind: input, shape index: {}]
  %s2 = inlined_call_operand.hbm [shape: f32[128,128], index: 2, kind: input, shape index: {}]
  %s3 = inlined_call_operand.hbm [shape: f32[16,16], index: 3, kind: input, shape index: {}]
  %s4 = inlined_call_operand.hbm [shape: f32[1,128], index: 4, kind: output, shape index: {}]
  %s5 = sld [smem:[#allocation0]]
  $region42: #{tpu_custom_call.1} parent=0
    _
  %s7 = ssub.s32 1, %s5
  %s8 = scalar_select 0, %s7, %s5
  $region1: #{tpu_custom_call.1} parent=0
    #allocation2 [shape = 'u8[8192]{0}', space=vmem, size = 0x2000, scoped, tag = 'input window, operand 0, single buffered']
    #allocation3 [shape = 's32[1]{0}', space=sflag, size = 0x4, scoped, tag = 'scoped memory for tpu_custom_call.1']
    #allocation4 [shape = 's32[1]{0}', space=sflag, size = 0x4, scoped, tag = 'scoped memory for tpu_custom_call.1']
    #allocation5 [shape = 'u8[8192]{0}', space=vmem, size = 0x2000, scoped, tag = 'input window, operand 1, single buffered']
    #allocation6 [shape = 's32[1]{0}', space=sflag, size = 0x4, scoped, tag = 'scoped memory for tpu_custom_call.1']
    #allocation7 [shape = 'u8[65536]{0}', space=vmem, size = 0x10000, scoped, tag = 'input window, operand 2, single buffered']
    #allocation8 [shape = 'u8[8192]{0}', space=vmem, size = 0x2000, scoped, tag = 'input window, operand 3, single buffered']
    #allocation9 [shape = 's32[1]{0}', space=sflag, size = 0x4, scoped, tag = 'scoped memory for tpu_custom_call.1']
    #allocation10 [shape = 'u8[512]{0}', space=vmem, size = 0x400, scoped, tag = 'output window, operand 0, single buffered']
    %9 = vsyncpa [#allocation3], 0
    %10 = vsyncpa [#allocation6], 0
    %11 = vsyncpa [#allocation9], 0
    %12 = vsyncpa [#allocation4], 0
    // Predicated region
    $region2: #{tpu_custom_call.1} parent=1 // pred_check
      _
    $region3: #{tpu_custom_call.1} parent=1 // pred_check_branch
      %14 = sbr.rel (0) target = $region5
    $region4: #{tpu_custom_call.1} parent=1 // pred_region
      %s16 = ssub.s32 256, 256
      %17 = vsyncadd [#allocation3], %s16
      %s18 = sshll.u32 [#allocation2], 4
      %s19 = int_to_ptr.vmem [resolvable:$true] %s18
      %24 = dma.hbm_to_vmem [thread:$0]  %s0, 256, %s19, [#allocation3], 128, 128, 8
    $region5: #{tpu_custom_call.1} parent=1 // pred_fallthru
      _
    // Predicated region
    $region6: #{tpu_custom_call.1} parent=1 // pred_check
      _
    $region7: #{tpu_custom_call.1} parent=1 // pred_check_branch
      %26 = sbr.rel (0) target = $region9
    $region8: #{tpu_custom_call.1} parent=1 // pred_region
      %s28 = ssub.s32 256, 256
      %29 = vsyncadd [#allocation6], %s28
      %s30 = sshll.u32 [#allocation5], 4
      %s31 = int_to_ptr.vmem [resolvable:$true] %s30
      %36 = dma.hbm_to_vmem [thread:$0]  %s1, 256, %s31, [#allocation6], 128, 128, 8
    $region9: #{tpu_custom_call.1} parent=1 // pred_fallthru
      _
    // Predicated region
    $region10: #{tpu_custom_call.1} parent=1 // pred_check
      _
    $region11: #{tpu_custom_call.1} parent=1 // pred_check_branch
      %38 = sbr.rel (0) target = $region13
    $region12: #{tpu_custom_call.1} parent=1 // pred_region
      %s40 = ssub.s32 2048, 2048
      %41 = vsyncadd [#allocation6], %s40
      %s42 = sshll.u32 [#allocation7], 4
      %s43 = int_to_ptr.vmem [resolvable:$true] %s42
      %48 = dma.hbm_to_vmem [thread:$0]  %s2, 2048, %s43, [#allocation6], 128, 128, 8
    $region13: #{tpu_custom_call.1} parent=1 // pred_fallthru
      _
    // Predicated region
    $region14: #{tpu_custom_call.1} parent=1 // pred_check
      _
    $region15: #{tpu_custom_call.1} parent=1 // pred_check_branch
      %50 = sbr.rel (0) target = $region17
    $region16: #{tpu_custom_call.1} parent=1 // pred_region
      %s52 = ssub.s32 256, 256
      %53 = vsyncadd [#allocation9], %s52
      %s54 = sshll.u32 [#allocation8], 4
      %s55 = int_to_ptr.vmem [resolvable:$true] %s54
      %60 = dma.hbm_to_vmem [thread:$0]  %s3, 256, %s55, [#allocation9], 128, 128, 8
    $region17: #{tpu_custom_call.1} parent=1 // pred_fallthru
      _
    // Predicated region
    $region18: #{tpu_custom_call.1} parent=1 // pred_check
      _
    $region19: #{tpu_custom_call.1} parent=1 // pred_check_branch
      %62 = sbr.rel (0) target = $region21
    $region20: #{tpu_custom_call.1} parent=1 // pred_region
      %63 = dma.done [#allocation3], 256
    $region21: #{tpu_custom_call.1} parent=1 // pred_fallthru
      _
    // Predicated region
    $region22: #{tpu_custom_call.1} parent=1 // pred_check
      _
    $region23: #{tpu_custom_call.1} parent=1 // pred_check_branch
      %65 = sbr.rel (0) target = $region25
    $region24: #{tpu_custom_call.1} parent=1 // pred_region
      %66 = dma.done [#allocation6], 256
    $region25: #{tpu_custom_call.1} parent=1 // pred_fallthru
      _
    // Predicated region
    $region26: #{tpu_custom_call.1} parent=1 // pred_check
      _
    $region27: #{tpu_custom_call.1} parent=1 // pred_check_branch
      %68 = sbr.rel (0) target = $region29
    $region28: #{tpu_custom_call.1} parent=1 // pred_region
      %69 = dma.done [#allocation6], 2048
    $region29: #{tpu_custom_call.1} parent=1 // pred_fallthru
      _
    // Predicated region
    $region30: #{tpu_custom_call.1} parent=1 // pred_check
      _
    $region31: #{tpu_custom_call.1} parent=1 // pred_check_branch
      %71 = sbr.rel (0) target = $region33
    $region32: #{tpu_custom_call.1} parent=1 // pred_region
      %72 = dma.done [#allocation9], 256
    $region33: #{tpu_custom_call.1} parent=1 // pred_fallthru
      _
    %v73 = vld [vmem:[#allocation2] sm:$0xff]
    %v74 = vld [vmem:[#allocation2 + $0x8] sm:$0xff]
    %v75 = vld [vmem:[#allocation5] sm:$0xff]
    %v76 = vld [vmem:[#allocation5 + $0x8] sm:$0xff]
    %v77 = vld [vmem:[#allocation7] sm:$0xff]
    %v78 = vld [vmem:[#allocation7 + $0x8] sm:$0xff]
    %v79 = vld [vmem:[#allocation7 + $0x10] sm:$0xff]
    %v80 = vld [vmem:[#allocation7 + $0x18] sm:$0xff]
    %v81 = vld [vmem:[#allocation7 + $0x20] sm:$0xff]
    %v82 = vld [vmem:[#allocation7 + $0x28] sm:$0xff]
    %v83 = vld [vmem:[#allocation7 + $0x30] sm:$0xff]
    %v84 = vld [vmem:[#allocation7 + $0x38] sm:$0xff]
    %v85 = vld [vmem:[#allocation7 + $0x40] sm:$0xff]
    %v86 = vld [vmem:[#allocation7 + $0x48] sm:$0xff]
    %v87 = vld [vmem:[#allocation7 + $0x50] sm:$0xff]
    %v88 = vld [vmem:[#allocation7 + $0x58] sm:$0xff]
    %v89 = vld [vmem:[#allocation7 + $0x60] sm:$0xff]
    %v90 = vld [vmem:[#allocation7 + $0x68] sm:$0xff]
    %v91 = vld [vmem:[#allocation7 + $0x70] sm:$0xff]
    %v92 = vld [vmem:[#allocation7 + $0x78] sm:$0xff]
    %v93 = vld [vmem:[#allocation8] sm:$0xff]
    %v94 = vld [vmem:[#allocation8 + $0x8] sm:$0xff]
    %v95 = vmul.f32 %v73, %v73
    %v96 = vmul.f32 %v74, %v74
    %v97 = vmul.f32 %v75, %v75
    %v98 = vmul.f32 %v76, %v76
    %v99 = vmul.f32 %v73, %v75
    %v100 = vmul.f32 %v74, %v76
    %101 = vmatprep.subr.mxu0 0.0
    %102 = vmatpush1.msra.mxu0 %v92
    %103 = vmatprep.subr.mxu0 0.0
    %104 = vmatpush1.msra.mxu0 %v91
    %105 = vmatprep.subr.mxu0 0.0
    %106 = vmatpush1.msra.mxu0 %v90
    %107 = vmatprep.subr.mxu0 0.0
    %108 = vmatpush1.msra.mxu0 %v89
    %109 = vmatprep.subr.mxu0 0.0
    %110 = vmatpush1.msra.mxu0 %v88
    %111 = vmatprep.subr.mxu0 0.0
    %112 = vmatpush1.msra.mxu0 %v87
    %113 = vmatprep.subr.mxu0 0.0
    %114 = vmatpush1.msra.mxu0 %v86
    %115 = vmatprep.subr.mxu0 0.0
    %116 = vmatpush1.msra.mxu0 %v85
    %117 = vmatprep.subr.mxu0 0.0
    %118 = vmatpush1.msra.mxu0 %v84
    %119 = vmatprep.subr.mxu0 0.0
    %120 = vmatpush1.msra.mxu0 %v83
    %121 = vmatprep.subr.mxu0 0.0
    %122 = vmatpush1.msra.mxu0 %v82
    %123 = vmatprep.subr.mxu0 0.0
    %124 = vmatpush1.msra.mxu0 %v81
    %125 = vmatprep.subr.mxu0 0.0
    %126 = vmatpush1.msra.mxu0 %v80
    %127 = vmatprep.subr.mxu0 0.0
    %128 = vmatpush1.msra.mxu0 %v79
    %129 = vmatprep.subr.mxu0 0.0
    %130 = vmatpush1.msra.mxu0 %v78
    %131 = vmatprep.subr.mxu0 0.0
    %132 = vmatpush1.msra.mxu0 %v77
    %133 = vmatprep.subr.mxu0 0.0
    %134 = vmatpush2.msra.mxu0 0.0
    %135 = vmatprep.subr.mxu0 0.0
    %136 = vmatpush2.msra.mxu0 0.0
    %137 = vmatprep.subr.mxu0 0.0
    %138 = vmatpush2.msra.mxu0 0.0
    %139 = vmatprep.subr.mxu0 0.0
    %140 = vmatpush2.msra.mxu0 0.0
    %141 = vmatprep.subr.mxu0 0.0
    %142 = vmatpush2.msra.mxu0 0.0
    %143 = vmatprep.subr.mxu0 0.0
    %144 = vmatpush2.msra.mxu0 0.0
    %145 = vmatprep.subr.mxu0 0.0
    %146 = vmatpush2.msra.mxu0 0.0
    %147 = vmatprep.subr.mxu0 0.0
    %148 = vmatpush2.msra.mxu0 0.0
    %149 = vmatprep.subr.mxu0 0.0
    %150 = vmatpush2.msra.mxu0 0.0
    %151 = vmatprep.subr.mxu0 0.0
    %152 = vmatpush2.msra.mxu0 0.0
    %153 = vmatprep.subr.mxu0 0.0
    %154 = vmatpush2.msra.mxu0 0.0
    %155 = vmatprep.subr.mxu0 0.0
    %156 = vmatpush2.msra.mxu0 0.0
    %157 = vmatprep.subr.mxu0 0.0
    %158 = vmatpush2.msra.mxu0 0.0
    %159 = vmatprep.subr.mxu0 0.0
    %160 = vmatpush2.msra.mxu0 0.0
    %161 = vmatprep.subr.mxu0 0.0
    %162 = vmatpush2.msra.mxu0 0.0
    %163 = vmatprep.subr.mxu0 0.0
    %164 = vmatpush2.msra.mxu0 0.0
    %165 = vmatprep.mubr.f32.mxu0 0.0
    %166 = vmatmul.mubr.f32.gmra.mxu0 %v73
    %v167 = vpop.f32.mrf.mxu0
    %v168 = vadd.f32 0.0, %v167
    %v169 = vpop.f32.mrf.mxu0
    %170 = vmatprep.mubr.f32.mxu0 0.0
    %171 = vmatmul.mubr.f32.gmra.mxu0 %v74
    %v172 = vpop.f32.mrf.mxu0
    %v173 = vadd.f32 0.0, %v172
    %v174 = vpop.f32.mrf.mxu0
    %175 = vmatprep.mubr.f32.mxu0 0.0
    %176 = vmatmul.mubr.f32.gmra.mxu0 %v75
    %v177 = vpop.f32.mrf.mxu0
    %v178 = vadd.f32 0.0, %v177
    %v179 = vpop.f32.mrf.mxu0
    %180 = vmatprep.mubr.f32.mxu0 0.0
    %181 = vmatmul.mubr.f32.gmra.mxu0 %v76
    %v182 = vpop.f32.mrf.mxu0
    %v183 = vadd.f32 0.0, %v182
    %v184 = vpop.f32.mrf.mxu0
    %185 = vmatprep.mubr.f32.mxu0 0.0
    %186 = vmatmul.mubr.f32.gmra.mxu0 %v95
    %v187 = vpop.f32.mrf.mxu0
    %v188 = vadd.f32 0.0, %v187
    %v189 = vpop.f32.mrf.mxu0
    %190 = vmatprep.mubr.f32.mxu0 0.0
    %191 = vmatmul.mubr.f32.gmra.mxu0 %v96
    %v192 = vpop.f32.mrf.mxu0
    %v193 = vadd.f32 0.0, %v192
    %v194 = vpop.f32.mrf.mxu0
    %195 = vmatprep.mubr.f32.mxu0 0.0
    %196 = vmatmul.mubr.f32.gmra.mxu0 %v97
    %v197 = vpop.f32.mrf.mxu0
    %v198 = vadd.f32 0.0, %v197
    %v199 = vpop.f32.mrf.mxu0
    %200 = vmatprep.mubr.f32.mxu0 0.0
    %201 = vmatmul.mubr.f32.gmra.mxu0 %v98
    %v202 = vpop.f32.mrf.mxu0
    %v203 = vadd.f32 0.0, %v202
    %v204 = vpop.f32.mrf.mxu0
    %205 = vmatprep.mubr.f32.mxu0 0.0
    %206 = vmatmul.mubr.f32.gmra.mxu0 %v99
    %v207 = vpop.f32.mrf.mxu0
    %v208 = vadd.f32 0.0, %v207
    %v209 = vpop.f32.mrf.mxu0
    %210 = vmatprep.mubr.f32.mxu0 0.0
    %211 = vmatmul.mubr.f32.gmra.mxu0 %v100
    %v212 = vpop.f32.mrf.mxu0
    %v213 = vadd.f32 0.0, %v212
    %v214 = vpop.f32.mrf.mxu0
    %215 = vdwg.mxu0
    %vm216 = vcmask 130048
    %v218 = vsel %vm216, %v93, 0
    %v221 = vsel %vm216, %v94, 0
    %223 = vmatprep.subr.mxu0 0.0
    %224 = vmatpush1.msra.mxu0 0.0
    %225 = vmatprep.subr.mxu0 0.0
    %226 = vmatpush1.msra.mxu0 0.0
    %227 = vmatprep.subr.mxu0 0.0
    %228 = vmatpush1.msra.mxu0 0.0
    %229 = vmatprep.subr.mxu0 0.0
    %230 = vmatpush1.msra.mxu0 0.0
    %231 = vmatprep.subr.mxu0 0.0
    %232 = vmatpush1.msra.mxu0 0.0
    %233 = vmatprep.subr.mxu0 0.0
    %234 = vmatpush1.msra.mxu0 0.0
    %235 = vmatprep.subr.mxu0 0.0
    %236 = vmatpush1.msra.mxu0 0.0
    %237 = vmatprep.subr.mxu0 0.0
    %238 = vmatpush1.msra.mxu0 0.0
    %239 = vmatprep.subr.mxu0 0.0
    %240 = vmatpush1.msra.mxu0 0.0
    %241 = vmatprep.subr.mxu0 0.0
    %242 = vmatpush1.msra.mxu0 0.0
    %243 = vmatprep.subr.mxu0 0.0
    %244 = vmatpush1.msra.mxu0 0.0
    %245 = vmatprep.subr.mxu0 0.0
    %246 = vmatpush1.msra.mxu0 0.0
    %247 = vmatprep.subr.mxu0 0.0
    %248 = vmatpush1.msra.mxu0 0.0
    %249 = vmatprep.subr.mxu0 0.0
    %250 = vmatpush1.msra.mxu0 0.0
    %251 = vmatprep.subr.mxu0 0.0
    %252 = vmatpush1.msra.mxu0 %v173
    %253 = vmatprep.subr.mxu0 0.0
    %254 = vmatpush1.msra.mxu0 %v168
    %255 = vmatprep.subr.mxu0 0.0
    %256 = vmatpush2.msra.mxu0 0.0
    %257 = vmatprep.subr.mxu0 0.0
    %258 = vmatpush2.msra.mxu0 0.0
    %259 = vmatprep.subr.mxu0 0.0
    %260 = vmatpush2.msra.mxu0 0.0
    %261 = vmatprep.subr.mxu0 0.0
    %262 = vmatpush2.msra.mxu0 0.0
    %263 = vmatprep.subr.mxu0 0.0
    %264 = vmatpush2.msra.mxu0 0.0
    %265 = vmatprep.subr.mxu0 0.0
    %266 = vmatpush2.msra.mxu0 0.0
    %267 = vmatprep.subr.mxu0 0.0
    %268 = vmatpush2.msra.mxu0 0.0
    %269 = vmatprep.subr.mxu0 0.0
    %270 = vmatpush2.msra.mxu0 0.0
    %271 = vmatprep.subr.mxu0 0.0
    %272 = vmatpush2.msra.mxu0 0.0
    %273 = vmatprep.subr.mxu0 0.0
    %274 = vmatpush2.msra.mxu0 0.0
    %275 = vmatprep.subr.mxu0 0.0
    %276 = vmatpush2.msra.mxu0 0.0
    %277 = vmatprep.subr.mxu0 0.0
    %278 = vmatpush2.msra.mxu0 0.0
    %279 = vmatprep.subr.mxu0 0.0
    %280 = vmatpush2.msra.mxu0 0.0
    %281 = vmatprep.subr.mxu0 0.0
    %282 = vmatpush2.msra.mxu0 0.0
    %283 = vmatprep.subr.mxu0 0.0
    %284 = vmatpush2.msra.mxu0 0.0
    %285 = vmatprep.subr.mxu0 0.0
    %286 = vmatpush2.msra.mxu0 0.0
    %287 = vmatprep.mubr.f32.mxu0 0.0
    %288 = vmatmul.mubr.f32.gmra.mxu0 %v218
    %v289 = vpop.f32.mrf.mxu0
    %v290 = vadd.f32 0.0, %v289
    %v291 = vpop.f32.mrf.mxu0
    %292 = vmatprep.mubr.f32.mxu0 0.0
    %293 = vmatmul.mubr.f32.gmra.mxu0 %v221
    %v294 = vpop.f32.mrf.mxu0
    %v295 = vadd.f32 0.0, %v294
    %v296 = vpop.f32.mrf.mxu0
    %297 = vdwg.mxu0
    %298 = vmatprep.subr.mxu0 0.0
    %299 = vmatpush1.msra.mxu0 0.0
    %300 = vmatprep.subr.mxu0 0.0
    %301 = vmatpush1.msra.mxu0 0.0
    %302 = vmatprep.subr.mxu0 0.0
    %303 = vmatpush1.msra.mxu0 0.0
    %304 = vmatprep.subr.mxu0 0.0
    %305 = vmatpush1.msra.mxu0 0.0
    %306 = vmatprep.subr.mxu0 0.0
    %307 = vmatpush1.msra.mxu0 0.0
    %308 = vmatprep.subr.mxu0 0.0
    %309 = vmatpush1.msra.mxu0 0.0
    %310 = vmatprep.subr.mxu0 0.0
    %311 = vmatpush1.msra.mxu0 0.0
    %312 = vmatprep.subr.mxu0 0.0
    %313 = vmatpush1.msra.mxu0 0.0
    %314 = vmatprep.subr.mxu0 0.0
    %315 = vmatpush1.msra.mxu0 0.0
    %316 = vmatprep.subr.mxu0 0.0
    %317 = vmatpush1.msra.mxu0 0.0
    %318 = vmatprep.subr.mxu0 0.0
    %319 = vmatpush1.msra.mxu0 0.0
    %320 = vmatprep.subr.mxu0 0.0
    %321 = vmatpush1.msra.mxu0 0.0
    %322 = vmatprep.subr.mxu0 0.0
    %323 = vmatpush1.msra.mxu0 0.0
    %324 = vmatprep.subr.mxu0 0.0
    %325 = vmatpush1.msra.mxu0 0.0
    %326 = vmatprep.subr.mxu0 0.0
    %327 = vmatpush1.msra.mxu0 %v183
    %328 = vmatprep.subr.mxu0 0.0
    %329 = vmatpush1.msra.mxu0 %v178
    %330 = vmatprep.subr.mxu0 0.0
    %331 = vmatpush2.msra.mxu0 0.0
    %332 = vmatprep.subr.mxu0 0.0
    %333 = vmatpush2.msra.mxu0 0.0
    %334 = vmatprep.subr.mxu0 0.0
    %335 = vmatpush2.msra.mxu0 0.0
    %336 = vmatprep.subr.mxu0 0.0
    %337 = vmatpush2.msra.mxu0 0.0
    %338 = vmatprep.subr.mxu0 0.0
    %339 = vmatpush2.msra.mxu0 0.0
    %340 = vmatprep.subr.mxu0 0.0
    %341 = vmatpush2.msra.mxu0 0.0
    %342 = vmatprep.subr.mxu0 0.0
    %343 = vmatpush2.msra.mxu0 0.0
    %344 = vmatprep.subr.mxu0 0.0
    %345 = vmatpush2.msra.mxu0 0.0
    %346 = vmatprep.subr.mxu0 0.0
    %347 = vmatpush2.msra.mxu0 0.0
    %348 = vmatprep.subr.mxu0 0.0
    %349 = vmatpush2.msra.mxu0 0.0
    %350 = vmatprep.subr.mxu0 0.0
    %351 = vmatpush2.msra.mxu0 0.0
    %352 = vmatprep.subr.mxu0 0.0
    %353 = vmatpush2.msra.mxu0 0.0
    %354 = vmatprep.subr.mxu0 0.0
    %355 = vmatpush2.msra.mxu0 0.0
    %356 = vmatprep.subr.mxu0 0.0
    %357 = vmatpush2.msra.mxu0 0.0
    %358 = vmatprep.subr.mxu0 0.0
    %359 = vmatpush2.msra.mxu0 0.0
    %360 = vmatprep.subr.mxu0 0.0
    %361 = vmatpush2.msra.mxu0 0.0
    %362 = vmatprep.mubr.f32.mxu0 0.0
    %363 = vmatmul.mubr.f32.gmra.mxu0 %v218
    %v364 = vpop.f32.mrf.mxu0
    %v365 = vadd.f32 0.0, %v364
    %v366 = vpop.f32.mrf.mxu0
    %367 = vmatprep.mubr.f32.mxu0 0.0
    %368 = vmatmul.mubr.f32.gmra.mxu0 %v221
    %v369 = vpop.f32.mrf.mxu0
    %v370 = vadd.f32 0.0, %v369
    %v371 = vpop.f32.mrf.mxu0
    %372 = vdwg.mxu0
    %373 = vmatprep.subr.mxu0 0.0
    %374 = vmatpush1.msra.mxu0 0.0
    %375 = vmatprep.subr.mxu0 0.0
    %376 = vmatpush1.msra.mxu0 0.0
    %377 = vmatprep.subr.mxu0 0.0
    %378 = vmatpush1.msra.mxu0 0.0
    %379 = vmatprep.subr.mxu0 0.0
    %380 = vmatpush1.msra.mxu0 0.0
    %381 = vmatprep.subr.mxu0 0.0
    %382 = vmatpush1.msra.mxu0 0.0
    %383 = vmatprep.subr.mxu0 0.0
    %384 = vmatpush1.msra.mxu0 0.0
    %385 = vmatprep.subr.mxu0 0.0
    %386 = vmatpush1.msra.mxu0 0.0
    %387 = vmatprep.subr.mxu0 0.0
    %388 = vmatpush1.msra.mxu0 0.0
    %389 = vmatprep.subr.mxu0 0.0
    %390 = vmatpush1.msra.mxu0 0.0
    %391 = vmatprep.subr.mxu0 0.0
    %392 = vmatpush1.msra.mxu0 0.0
    %393 = vmatprep.subr.mxu0 0.0
    %394 = vmatpush1.msra.mxu0 0.0
    %395 = vmatprep.subr.mxu0 0.0
    %396 = vmatpush1.msra.mxu0 0.0
    %397 = vmatprep.subr.mxu0 0.0
    %398 = vmatpush1.msra.mxu0 0.0
    %399 = vmatprep.subr.mxu0 0.0
    %400 = vmatpush1.msra.mxu0 0.0
    %401 = vmatprep.subr.mxu0 0.0
    %402 = vmatpush1.msra.mxu0 %v193
    %403 = vmatprep.subr.mxu0 0.0
    %404 = vmatpush1.msra.mxu0 %v188
    %405 = vmatprep.subr.mxu0 0.0
    %406 = vmatpush2.msra.mxu0 0.0
    %407 = vmatprep.subr.mxu0 0.0
    %408 = vmatpush2.msra.mxu0 0.0
    %409 = vmatprep.subr.mxu0 0.0
    %410 = vmatpush2.msra.mxu0 0.0
    %411 = vmatprep.subr.mxu0 0.0
    %412 = vmatpush2.msra.mxu0 0.0
    %413 = vmatprep.subr.mxu0 0.0
    %414 = vmatpush2.msra.mxu0 0.0
    %415 = vmatprep.subr.mxu0 0.0
    %416 = vmatpush2.msra.mxu0 0.0
    %417 = vmatprep.subr.mxu0 0.0
    %418 = vmatpush2.msra.mxu0 0.0
    %419 = vmatprep.subr.mxu0 0.0
    %420 = vmatpush2.msra.mxu0 0.0
    %421 = vmatprep.subr.mxu0 0.0
    %422 = vmatpush2.msra.mxu0 0.0
    %423 = vmatprep.subr.mxu0 0.0
    %424 = vmatpush2.msra.mxu0 0.0
    %425 = vmatprep.subr.mxu0 0.0
    %426 = vmatpush2.msra.mxu0 0.0
    %427 = vmatprep.subr.mxu0 0.0
    %428 = vmatpush2.msra.mxu0 0.0
    %429 = vmatprep.subr.mxu0 0.0
    %430 = vmatpush2.msra.mxu0 0.0
    %431 = vmatprep.subr.mxu0 0.0
    %432 = vmatpush2.msra.mxu0 0.0
    %433 = vmatprep.subr.mxu0 0.0
    %434 = vmatpush2.msra.mxu0 0.0
    %435 = vmatprep.subr.mxu0 0.0
    %436 = vmatpush2.msra.mxu0 0.0
    %437 = vmatprep.mubr.f32.mxu0 0.0
    %438 = vmatmul.mubr.f32.gmra.mxu0 %v218
    %v439 = vpop.f32.mrf.mxu0
    %v440 = vadd.f32 0.0, %v439
    %v441 = vpop.f32.mrf.mxu0
    %442 = vmatprep.mubr.f32.mxu0 0.0
    %443 = vmatmul.mubr.f32.gmra.mxu0 %v221
    %v444 = vpop.f32.mrf.mxu0
    %v445 = vadd.f32 0.0, %v444
    %v446 = vpop.f32.mrf.mxu0
    %447 = vdwg.mxu0
    %448 = vmatprep.subr.mxu0 0.0
    %449 = vmatpush1.msra.mxu0 0.0
    %450 = vmatprep.subr.mxu0 0.0
    %451 = vmatpush1.msra.mxu0 0.0
    %452 = vmatprep.subr.mxu0 0.0
    %453 = vmatpush1.msra.mxu0 0.0
    %454 = vmatprep.subr.mxu0 0.0
    %455 = vmatpush1.msra.mxu0 0.0
    %456 = vmatprep.subr.mxu0 0.0
    %457 = vmatpush1.msra.mxu0 0.0
    %458 = vmatprep.subr.mxu0 0.0
    %459 = vmatpush1.msra.mxu0 0.0
    %460 = vmatprep.subr.mxu0 0.0
    %461 = vmatpush1.msra.mxu0 0.0
    %462 = vmatprep.subr.mxu0 0.0
    %463 = vmatpush1.msra.mxu0 0.0
    %464 = vmatprep.subr.mxu0 0.0
    %465 = vmatpush1.msra.mxu0 0.0
    %466 = vmatprep.subr.mxu0 0.0
    %467 = vmatpush1.msra.mxu0 0.0
    %468 = vmatprep.subr.mxu0 0.0
    %469 = vmatpush1.msra.mxu0 0.0
    %470 = vmatprep.subr.mxu0 0.0
    %471 = vmatpush1.msra.mxu0 0.0
    %472 = vmatprep.subr.mxu0 0.0
    %473 = vmatpush1.msra.mxu0 0.0
    %474 = vmatprep.subr.mxu0 0.0
    %475 = vmatpush1.msra.mxu0 0.0
    %476 = vmatprep.subr.mxu0 0.0
    %477 = vmatpush1.msra.mxu0 %v203
    %478 = vmatprep.subr.mxu0 0.0
    %479 = vmatpush1.msra.mxu0 %v198
    %480 = vmatprep.subr.mxu0 0.0
    %481 = vmatpush2.msra.mxu0 0.0
    %482 = vmatprep.subr.mxu0 0.0
    %483 = vmatpush2.msra.mxu0 0.0
    %484 = vmatprep.subr.mxu0 0.0
    %485 = vmatpush2.msra.mxu0 0.0
    %486 = vmatprep.subr.mxu0 0.0
    %487 = vmatpush2.msra.mxu0 0.0
    %488 = vmatprep.subr.mxu0 0.0
    %489 = vmatpush2.msra.mxu0 0.0
    %490 = vmatprep.subr.mxu0 0.0
    %491 = vmatpush2.msra.mxu0 0.0
    %492 = vmatprep.subr.mxu0 0.0
    %493 = vmatpush2.msra.mxu0 0.0
    %494 = vmatprep.subr.mxu0 0.0
    %495 = vmatpush2.msra.mxu0 0.0
    %496 = vmatprep.subr.mxu0 0.0
    %497 = vmatpush2.msra.mxu0 0.0
    %498 = vmatprep.subr.mxu0 0.0
    %499 = vmatpush2.msra.mxu0 0.0
    %500 = vmatprep.subr.mxu0 0.0
    %501 = vmatpush2.msra.mxu0 0.0
    %502 = vmatprep.subr.mxu0 0.0
    %503 = vmatpush2.msra.mxu0 0.0
    %504 = vmatprep.subr.mxu0 0.0
    %505 = vmatpush2.msra.mxu0 0.0
    %506 = vmatprep.subr.mxu0 0.0
    %507 = vmatpush2.msra.mxu0 0.0
    %508 = vmatprep.subr.mxu0 0.0
    %509 = vmatpush2.msra.mxu0 0.0
    %510 = vmatprep.subr.mxu0 0.0
    %511 = vmatpush2.msra.mxu0 0.0
    %512 = vmatprep.mubr.f32.mxu0 0.0
    %513 = vmatmul.mubr.f32.gmra.mxu0 %v218
    %v514 = vpop.f32.mrf.mxu0
    %v515 = vadd.f32 0.0, %v514
    %v516 = vpop.f32.mrf.mxu0
    %517 = vmatprep.mubr.f32.mxu0 0.0
    %518 = vmatmul.mubr.f32.gmra.mxu0 %v221
    %v519 = vpop.f32.mrf.mxu0
    %v520 = vadd.f32 0.0, %v519
    %v521 = vpop.f32.mrf.mxu0
    %522 = vdwg.mxu0
    %523 = vmatprep.subr.mxu0 0.0
    %524 = vmatpush1.msra.mxu0 0.0
    %525 = vmatprep.subr.mxu0 0.0
    %526 = vmatpush1.msra.mxu0 0.0
    %527 = vmatprep.subr.mxu0 0.0
    %528 = vmatpush1.msra.mxu0 0.0
    %529 = vmatprep.subr.mxu0 0.0
    %530 = vmatpush1.msra.mxu0 0.0
    %531 = vmatprep.subr.mxu0 0.0
    %532 = vmatpush1.msra.mxu0 0.0
    %533 = vmatprep.subr.mxu0 0.0
    %534 = vmatpush1.msra.mxu0 0.0
    %535 = vmatprep.subr.mxu0 0.0
    %536 = vmatpush1.msra.mxu0 0.0
    %537 = vmatprep.subr.mxu0 0.0
    %538 = vmatpush1.msra.mxu0 0.0
    %539 = vmatprep.subr.mxu0 0.0
    %540 = vmatpush1.msra.mxu0 0.0
    %541 = vmatprep.subr.mxu0 0.0
    %542 = vmatpush1.msra.mxu0 0.0
    %543 = vmatprep.subr.mxu0 0.0
    %544 = vmatpush1.msra.mxu0 0.0
    %545 = vmatprep.subr.mxu0 0.0
    %546 = vmatpush1.msra.mxu0 0.0
    %547 = vmatprep.subr.mxu0 0.0
    %548 = vmatpush1.msra.mxu0 0.0
    %549 = vmatprep.subr.mxu0 0.0
    %550 = vmatpush1.msra.mxu0 0.0
    %551 = vmatprep.subr.mxu0 0.0
    %552 = vmatpush1.msra.mxu0 %v213
    %553 = vmatprep.subr.mxu0 0.0
    %554 = vmatpush1.msra.mxu0 %v208
    %555 = vmatprep.subr.mxu0 0.0
    %556 = vmatpush2.msra.mxu0 0.0
    %557 = vmatprep.subr.mxu0 0.0
    %558 = vmatpush2.msra.mxu0 0.0
    %559 = vmatprep.subr.mxu0 0.0
    %560 = vmatpush2.msra.mxu0 0.0
    %561 = vmatprep.subr.mxu0 0.0
    %562 = vmatpush2.msra.mxu0 0.0
    %563 = vmatprep.subr.mxu0 0.0
    %564 = vmatpush2.msra.mxu0 0.0
    %565 = vmatprep.subr.mxu0 0.0
    %566 = vmatpush2.msra.mxu0 0.0
    %567 = vmatprep.subr.mxu0 0.0
    %568 = vmatpush2.msra.mxu0 0.0
    %569 = vmatprep.subr.mxu0 0.0
    %570 = vmatpush2.msra.mxu0 0.0
    %571 = vmatprep.subr.mxu0 0.0
    %572 = vmatpush2.msra.mxu0 0.0
    %573 = vmatprep.subr.mxu0 0.0
    %574 = vmatpush2.msra.mxu0 0.0
    %575 = vmatprep.subr.mxu0 0.0
    %576 = vmatpush2.msra.mxu0 0.0
    %577 = vmatprep.subr.mxu0 0.0
    %578 = vmatpush2.msra.mxu0 0.0
    %579 = vmatprep.subr.mxu0 0.0
    %580 = vmatpush2.msra.mxu0 0.0
    %581 = vmatprep.subr.mxu0 0.0
    %582 = vmatpush2.msra.mxu0 0.0
    %583 = vmatprep.subr.mxu0 0.0
    %584 = vmatpush2.msra.mxu0 0.0
    %585 = vmatprep.subr.mxu0 0.0
    %586 = vmatpush2.msra.mxu0 0.0
    %587 = vmatprep.mubr.f32.mxu0 0.0
    %588 = vmatmul.mubr.f32.gmra.mxu0 %v218
    %v589 = vpop.f32.mrf.mxu0
    %v590 = vadd.f32 0.0, %v589
    %v591 = vpop.f32.mrf.mxu0
    %592 = vmatprep.mubr.f32.mxu0 0.0
    %593 = vmatmul.mubr.f32.gmra.mxu0 %v221
    %v594 = vpop.f32.mrf.mxu0
    %v595 = vadd.f32 0.0, %v594
    %v596 = vpop.f32.mrf.mxu0
    %597 = vdwg.mxu0
    %v598 = vmul.f32 %v290, %v290
    %v599 = vmul.f32 %v295, %v295
    %v600 = vmul.f32 %v365, %v365
    %v601 = vmul.f32 %v370, %v370
    %v602 = vmul.f32 %v290, %v365
    %v603 = vmul.f32 %v295, %v370
    %v604 = vsub.f32 %v440, %v598
    %v605 = vsub.f32 %v445, %v599
    %v606 = vsub.f32 %v515, %v600
    %v607 = vsub.f32 %v520, %v601
    %v608 = vsub.f32 %v590, %v602
    %v609 = vsub.f32 %v595, %v603
    %v610 = vmul.f32 %v602, 2.0
    %v611 = vmul.f32 %v603, 2.0
    %v612 = vadd.f32 %v610, 0.0001
    %v613 = vadd.f32 %v611, 0.0001
    %v614 = vmul.f32 %v608, 2.0
    %v615 = vmul.f32 %v609, 2.0
    %v616 = vadd.f32 %v614, 0.0009
    %v617 = vadd.f32 %v615, 0.0009
    %v618 = vmul.f32 %v612, %v616
    %v619 = vmul.f32 %v613, %v617
    %v620 = vadd.f32 %v598, %v600
    %v621 = vadd.f32 %v599, %v601
    %v622 = vadd.f32 %v620, 0.0001
    %v623 = vadd.f32 %v621, 0.0001
    %v624 = vadd.f32 %v604, %v606
    %v625 = vadd.f32 %v605, %v607
    %v626 = vadd.f32 %v624, 0.0009
    %v627 = vadd.f32 %v625, 0.0009
    %v628 = vmul.f32 %v622, %v626
    %v629 = vmul.f32 %v623, %v627
    %v630 = vrcp.pop %v628
    %v631 = vrcp.pop %v629
    %v632 = vmul.f32 %v618, %v630
    %v633 = vmul.f32 %v619, %v631
    %v634 = vadd.f32 %v632, %v633
    %v635 = vrot.slane %v634, 4
    %v636 = vadd.f32 %v634, %v635
    %v637 = vrot.slane %v636, 2
    %v638 = vadd.f32 %v636, %v637
    %v639 = vrot.slane %v638, 1
    %v640 = vadd.f32 %v638, %v639
    %641 = vst [vmem:[#allocation10] sm:$0x1] %v640
    // Predicated region
    $region34: #{tpu_custom_call.1} parent=1 // pred_check
      _
    $region35: #{tpu_custom_call.1} parent=1 // pred_check_branch
      %643 = sbr.rel (0) target = $region37
    $region36: #{tpu_custom_call.1} parent=1 // pred_region
      %s645 = ssub.s32 16, 16
      %646 = vsyncadd [#allocation4], %s645
      %s648 = sshll.u32 [#allocation10], 4
      %s649 = int_to_ptr.vmem [resolvable:$true] %s648
      %651 = dma.vmem_to_hbm [thread:$0]  %s649, 16, %s4, [#allocation4]
    $region37: #{tpu_custom_call.1} parent=1 // pred_fallthru
      _
    // Predicated region
    $region38: #{tpu_custom_call.1} parent=1 // pred_check
      _
    $region39: #{tpu_custom_call.1} parent=1 // pred_check_branch
      %653 = sbr.rel (0) target = $region41
    $region40: #{tpu_custom_call.1} parent=1 // pred_region
      %654 = dma.done [#allocation4], 16
    $region41: #{tpu_custom_call.1} parent=1 // pred_fallthru
      _
    %655 = vsyncpa [#allocation3], 1
    %656 = vsyncpa [#allocation6], 1
    %657 = vsyncpa [#allocation9], 1
    %658 = vsyncpa [#allocation4], 1

</llo_original>
